<compile_context>
chip_gen: v7x
topology: tpu7x:2x2x1
jax: 0.10.0
libtpu: 0.0.40
codegen_flags: <defaults>
</compile_context>

<pallas_src>
import functools

import jax
import jax.numpy as jnp
from jax.experimental import pallas as pl
from jax.experimental.pallas import tpu as pltpu


def _shift_flat(x, s):
    """y[:, p] = x[:, p + s] with zero fill at the ends (s is a static int).

    Static lane slices + concat (cheap lane shifts), no sublane relayout.
    Positions that fall outside [0, N) are zero-filled; row-wrap reads of the
    +/-1 column shifts are removed by the source pre-masks in _im2col.
    """
    c, n = x.shape
    if s == 0:
        return x
    pad = jnp.zeros((c, abs(s)), x.dtype)
    if s > 0:
        return jnp.concatenate([x[:, s:], pad], axis=1)
    return jnp.concatenate([pad, x[:, :n + s]], axis=1)


def _im2col(x, W, lane_col):
    """x: (C, H*W) -> (9*C, H*W) patch matrix for a 3x3 SAME conv.

    Taps stacked in (kh, kw) row-major order with channels innermost, matching
    the OIHW -> (O, kh, kw, I) -> (O, 9*I) weight flattening in the wrapper.

    Row (h +/- 1) out-of-range is handled by the zero fill in _shift_flat.
    Column wrap: for dw=-1 taps the only invalid reads hit source columns with
    w == W-1 (and those columns are never validly read by that tap), and
    symmetrically w == 0 for dw=+1, so zeroing those source columns once per
    direction is exact -- 2 masks per conv instead of 6.
    """
    zero = jnp.zeros((), x.dtype)
    x_wm1 = jnp.where(lane_col != (W - 1), x, zero)  # source for taps reading w-1
    x_wp1 = jnp.where(lane_col != 0, x, zero)        # source for taps reading w+1
    pieces = []
    for dh in (-1, 0, 1):
        pieces.append(_shift_flat(x_wm1, dh * W - 1))   # (kh, kw=0)
        pieces.append(_shift_flat(x,      dh * W))      # (kh, kw=1)
        pieces.append(_shift_flat(x_wp1, dh * W + 1))   # (kh, kw=2)
    return jnp.concatenate(pieces, axis=0)


def rb_kernel(x_ref, w1_ref, b1_ref, w2_ref, b2_ref, o_ref, *, H, W, cast_early):
    """One batch element per grid step.

    x_ref:  (1, Cin,  H*W)  fp32, channels on sublanes, spatial on lanes
    w1_ref: (Cout, 9*Cin)   bf16 flattened conv1 weight
    b1_ref: (Cout, 1)       fp32 conv1 bias
    w2_ref: (Cout, 9*Cout)  bf16 flattened conv2 weight
    b2_ref: (Cout, 1)       fp32 conv2 bias
    o_ref:  (1, Cout, H*W)  fp32 output (lane-dense store)
    """
    HW = H * W
    x = x_ref[0]                                              # (Cin, HW) fp32
    lane_col = jax.lax.broadcasted_iota(jnp.int32, (1, HW), 1) % W

    # ---- conv1 + bias + ReLU: single fused K=9*Cin MXU matmul ----------------
    x_c = x.astype(jnp.bfloat16) if cast_early else x
    p1 = _im2col(x_c, W, lane_col)
    if not cast_early:
        p1 = p1.astype(jnp.bfloat16)
    acc1 = jnp.dot(w1_ref[...], p1, preferred_element_type=jnp.float32)
    y1 = jnp.maximum(acc1 + b1_ref[...], 0.0)                 # (Cout, HW) fp32

    # ---- conv2 * 0.1 + residual ----------------------------------------------
    y1_c = y1.astype(jnp.bfloat16) if cast_early else y1
    p2 = _im2col(y1_c, W, lane_col)
    if not cast_early:
        p2 = p2.astype(jnp.bfloat16)
    acc2 = jnp.dot(w2_ref[...], p2, preferred_element_type=jnp.float32)
    out = (acc2 + b2_ref[...]) * 0.1 + x                      # residual in fp32
    o_ref[0] = out.astype(o_ref.dtype)


@jax.jit
def rb_forward(x_nchw, w1_oihw, b1, w2_oihw, b2):
    """PyTorch-facing wrapper: NCHW in, NCHW out.  Reshapes (not transposes)
    the spatial dims so no extra HBM pass is needed on either side."""
    B, Cin, H, W = x_nchw.shape
    Cout = w1_oihw.shape[0]
    assert Cin == Cout, "residual add requires in_channel == out_channel"
    HW = H * W

    x_flat = x_nchw.reshape(B, Cin, HW)  # free view (contiguous)

    # OIHW -> (O, kh, kw, I) -> (O, 9*I); bf16 for the MXU fast path (weights tiny).
    w1_flat = jnp.transpose(w1_oihw, (0, 2, 3, 1)).reshape(Cout, 9 * Cin)
    w2_flat = jnp.transpose(w2_oihw, (0, 2, 3, 1)).reshape(Cout, 9 * Cout)
    w1_flat = w1_flat.astype(jnp.bfloat16)
    w2_flat = w2_flat.astype(jnp.bfloat16)
    b1_2d = b1.reshape(Cout, 1).astype(jnp.float32)
    b2_2d = b2.reshape(Cout, 1).astype(jnp.float32)

    # bf16 im2col only when the per-tap channel blocks stay aligned with the
    # packed bf16 sublane tiling (16 rows); otherwise shift in fp32, cast once.
    cast_early = (Cin % 16 == 0)

    kernel = functools.partial(rb_kernel, H=H, W=W, cast_early=cast_early)
    # TODO(synk): for large H*W the (9*C, H*W) patch matrix should be tiled
    # along the spatial axis with a 1-row halo to stay inside v7x's 64 MiB VMEM.
    out = pl.pallas_call(
        kernel,
        out_shape=jax.ShapeDtypeStruct((B, Cout, HW), x_nchw.dtype),
        grid_spec=pltpu.PrefetchScalarGridSpec(
            num_scalar_prefetch=0,
            grid=(B,),
            in_specs=[
                pl.BlockSpec((1, Cin, HW), lambda b: (b, 0, 0)),
                pl.BlockSpec((Cout, 9 * Cin), lambda b: (0, 0)),
                pl.BlockSpec((Cout, 1), lambda b: (0, 0)),
                pl.BlockSpec((Cout, 9 * Cout), lambda b: (0, 0)),
                pl.BlockSpec((Cout, 1), lambda b: (0, 0)),
            ],
            out_specs=pl.BlockSpec((1, Cout, HW), lambda b: (b, 0, 0)),
        ),
        compiler_params=pltpu.CompilerParams(
            # batch elements are independent -> shard across v7x's 2 TensorCores
            dimension_semantics=("parallel",)),
    )(x_flat, w1_flat, b1_2d, w2_flat, b2_2d)
    return out.reshape(B, Cout, H, W)  # free view (contiguous)


def _reference_nchw(x, w1, b1, w2, b2):
    """Plain-JAX fp32 reference matching the PyTorch RB module."""
    def conv(x, w, b):
        y = jax.lax.conv_general_dilated(
            x, w, window_strides=(1, 1), padding="SAME",
            dimension_numbers=("NCHW", "OIHW", "NCHW"))
        return y + b.reshape(1, -1, 1, 1)
    out = jnp.maximum(conv(x, w1, b1), 0.0)
    return conv(out, w2, b2) * 0.1 + x


if __name__ == "__main__":
    # Small shapes consistent with RB(in_channel=C, out_channel=C).
    B, C, H, W = 2, 8, 16, 16

    key = jax.random.PRNGKey(0)
    kx, k1, kb1, k2, kb2 = jax.random.split(key, 5)

    # Deterministic parameter init (Kaiming-uniform-like scale, OIHW layout like PyTorch).
    fan_in = C * 3 * 3
    bound = 1.0 / jnp.sqrt(fan_in)
    w1 = jax.random.uniform(k1, (C, C, 3, 3), jnp.float32, -bound, bound)
    b1 = jax.random.uniform(kb1, (C,), jnp.float32, -bound, bound)
    w2 = jax.random.uniform(k2, (C, C, 3, 3), jnp.float32, -bound, bound)
    b2 = jax.random.uniform(kb2, (C,), jnp.float32, -bound, bound)

    x_nchw = jax.random.normal(kx, (B, C, H, W), jnp.float32)

    out = jax.block_until_ready(rb_forward(x_nchw, w1, b1, w2, b2))

    # Verify against the fp32 reference.  Matmul operands are bf16 (fp32
    # accumulation), so use a correspondingly loosened tolerance.
    ref = _reference_nchw(x_nchw, w1, b1, w2, b2)
    assert out.shape == (B, C, H, W)
    assert jnp.allclose(out, ref, atol=2e-2, rtol=2e-2), "mismatch vs reference"

    print("KERNEL_OK")
</pallas_src>

<mosaic_0001>
module attributes {stable_mosaic.version = 11 : i64} {
  func.func @rb_kernel(%arg0: i32, %arg1: memref<1x8x256xf32, #tpu.memory_space<vmem>>, %arg2: memref<8x72xbf16, #tpu.memory_space<vmem>>, %arg3: memref<8x1xf32, #tpu.memory_space<vmem>>, %arg4: memref<8x72xbf16, #tpu.memory_space<vmem>>, %arg5: memref<8x1xf32, #tpu.memory_space<vmem>>, %arg6: memref<1x8x256xf32, #tpu.memory_space<vmem>>) attributes {dimension_semantics = [#tpu.dimension_semantics<parallel>], iteration_bounds = array<i64: 2>, scalar_prefetch = 0 : i64, scratch_operands = 0 : i64, tpu.core_type = #tpu.core_type<tc>, window_params = [{transform_indices = @transform_0, window_bounds = array<i64: 1, 8, 256>}, {pipeline_mode = #tpu.pipeline_mode<synchronous>, transform_indices = @transform_1, window_bounds = array<i64: 8, 72>}, {pipeline_mode = #tpu.pipeline_mode<synchronous>, transform_indices = @transform_2, window_bounds = array<i64: 8, 1>}, {pipeline_mode = #tpu.pipeline_mode<synchronous>, transform_indices = @transform_3, window_bounds = array<i64: 8, 72>}, {pipeline_mode = #tpu.pipeline_mode<synchronous>, transform_indices = @transform_4, window_bounds = array<i64: 8, 1>}, {transform_indices = @transform_5, window_bounds = array<i64: 1, 8, 256>}]} {
    %c0 = arith.constant 0 : index
    %c0_0 = arith.constant 0 : index
    %c0_1 = arith.constant 0 : index
    %0 = vector.load %arg1[%c0, %c0_0, %c0_1] : memref<1x8x256xf32, #tpu.memory_space<vmem>>, vector<1x8x256xf32>
    %1 = vector.shape_cast %0 : vector<1x8x256xf32> to vector<8x256xf32>
    %2 = tpu.iota {dimensions = array<i32: 1>} : vector<1x256xi32>
    %c16_i32 = arith.constant 16 : i32
    %c0_i32 = arith.constant 0 : i32
    %3 = arith.cmpi eq, %c16_i32, %c0_i32 : i32
    %c1_i32 = arith.constant 1 : i32
    %4 = arith.select %3, %c1_i32, %c16_i32 : i32
    %5 = vector.broadcast %4 : i32 to vector<1x256xi32>
    %6 = arith.remsi %2, %5 : vector<1x256xi32>
    %c0_i32_2 = arith.constant 0 : i32
    %7 = vector.broadcast %c0_i32_2 : i32 to vector<1x256xi32>
    %8 = arith.cmpi ne, %6, %7 : vector<1x256xi32>
    %c0_i32_3 = arith.constant 0 : i32
    %9 = vector.broadcast %c0_i32_3 : i32 to vector<1x256xi32>
    %10 = arith.cmpi slt, %6, %9 : vector<1x256xi32>
    %c0_i32_4 = arith.constant 0 : i32
    %11 = arith.cmpi slt, %4, %c0_i32_4 : i32
    %12 = vector.broadcast %11 : i1 to vector<1x256xi1>
    %13 = vector.broadcast %12 : vector<1x256xi1> to vector<1x256xi1>
    %14 = arith.xori %10, %13 : vector<1x256xi1>
    %15 = arith.andi %14, %8 : vector<1x256xi1>
    %16 = vector.broadcast %4 : i32 to vector<1x256xi32>
    %17 = arith.addi %6, %16 : vector<1x256xi32>
    %18 = arith.select %15, %17, %6 : vector<1x256xi1>, vector<1x256xi32>
    %c15_i32 = arith.constant 15 : i32
    %19 = vector.broadcast %c15_i32 : i32 to vector<1x256xi32>
    %20 = arith.cmpi ne, %18, %19 : vector<1x256xi32>
    %cst = arith.constant 0.000000e+00 : f32
    %21 = vector.shape_cast %20 : vector<1x256xi1> to vector<1x256xi1>
    %22 = vector.broadcast %21 : vector<1x256xi1> to vector<8x256xi1>
    %23 = vector.broadcast %cst : f32 to vector<8x256xf32>
    %24 = arith.select %22, %1, %23 : vector<8x256xi1>, vector<8x256xf32>
    %c0_i32_5 = arith.constant 0 : i32
    %25 = vector.broadcast %c0_i32_5 : i32 to vector<1x256xi32>
    %26 = arith.cmpi ne, %18, %25 : vector<1x256xi32>
    %cst_6 = arith.constant 0.000000e+00 : f32
    %27 = vector.shape_cast %26 : vector<1x256xi1> to vector<1x256xi1>
    %28 = vector.broadcast %27 : vector<1x256xi1> to vector<8x256xi1>
    %29 = vector.broadcast %cst_6 : f32 to vector<8x256xf32>
    %30 = arith.select %28, %1, %29 : vector<8x256xi1>, vector<8x256xf32>
    %cst_7 = arith.constant 0.000000e+00 : f32
    %31 = vector.broadcast %cst_7 : f32 to vector<8x17xf32>
    %32 = vector.extract_strided_slice %24 {offsets = [0, 0], sizes = [8, 239], strides = [1, 1]} : vector<8x256xf32> to vector<8x239xf32>
    %33 = tpu.concatenate %31, %32 in 1 : vector<8x17xf32>, vector<8x239xf32> -> vector<8x256xf32>
    %cst_8 = arith.constant 0.000000e+00 : f32
    %34 = vector.broadcast %cst_8 : f32 to vector<8x16xf32>
    %35 = vector.extract_strided_slice %1 {offsets = [0, 0], sizes = [8, 240], strides = [1, 1]} : vector<8x256xf32> to vector<8x240xf32>
    %36 = tpu.concatenate %34, %35 in 1 : vector<8x16xf32>, vector<8x240xf32> -> vector<8x256xf32>
    %cst_9 = arith.constant 0.000000e+00 : f32
    %37 = vector.broadcast %cst_9 : f32 to vector<8x15xf32>
    %38 = vector.extract_strided_slice %30 {offsets = [0, 0], sizes = [8, 241], strides = [1, 1]} : vector<8x256xf32> to vector<8x241xf32>
    %39 = tpu.concatenate %37, %38 in 1 : vector<8x15xf32>, vector<8x241xf32> -> vector<8x256xf32>
    %cst_10 = arith.constant 0.000000e+00 : f32
    %40 = vector.broadcast %cst_10 : f32 to vector<8x1xf32>
    %41 = vector.extract_strided_slice %24 {offsets = [0, 0], sizes = [8, 255], strides = [1, 1]} : vector<8x256xf32> to vector<8x255xf32>
    %42 = tpu.concatenate %40, %41 in 1 : vector<8x1xf32>, vector<8x255xf32> -> vector<8x256xf32>
    %cst_11 = arith.constant 0.000000e+00 : f32
    %43 = vector.broadcast %cst_11 : f32 to vector<8x1xf32>
    %44 = vector.extract_strided_slice %30 {offsets = [0, 1], sizes = [8, 255], strides = [1, 1]} : vector<8x256xf32> to vector<8x255xf32>
    %45 = tpu.concatenate %44, %43 in 1 : vector<8x255xf32>, vector<8x1xf32> -> vector<8x256xf32>
    %cst_12 = arith.constant 0.000000e+00 : f32
    %46 = vector.broadcast %cst_12 : f32 to vector<8x15xf32>
    %47 = vector.extract_strided_slice %24 {offsets = [0, 15], sizes = [8, 241], strides = [1, 1]} : vector<8x256xf32> to vector<8x241xf32>
    %48 = tpu.concatenate %47, %46 in 1 : vector<8x241xf32>, vector<8x15xf32> -> vector<8x256xf32>
    %cst_13 = arith.constant 0.000000e+00 : f32
    %49 = vector.broadcast %cst_13 : f32 to vector<8x16xf32>
    %50 = vector.extract_strided_slice %1 {offsets = [0, 16], sizes = [8, 240], strides = [1, 1]} : vector<8x256xf32> to vector<8x240xf32>
    %51 = tpu.concatenate %50, %49 in 1 : vector<8x240xf32>, vector<8x16xf32> -> vector<8x256xf32>
    %cst_14 = arith.constant 0.000000e+00 : f32
    %52 = vector.broadcast %cst_14 : f32 to vector<8x17xf32>
    %53 = vector.extract_strided_slice %30 {offsets = [0, 17], sizes = [8, 239], strides = [1, 1]} : vector<8x256xf32> to vector<8x239xf32>
    %54 = tpu.concatenate %53, %52 in 1 : vector<8x239xf32>, vector<8x17xf32> -> vector<8x256xf32>
    %55 = tpu.concatenate %33, %36, %39, %42, %1, %45, %48, %51, %54 in 0 : vector<8x256xf32>, vector<8x256xf32>, vector<8x256xf32>, vector<8x256xf32>, vector<8x256xf32>, vector<8x256xf32>, vector<8x256xf32>, vector<8x256xf32>, vector<8x256xf32> -> vector<72x256xf32>
    %56 = arith.truncf %55 : vector<72x256xf32> to vector<72x256xbf16>
    %c0_15 = arith.constant 0 : index
    %c0_16 = arith.constant 0 : index
    %57 = vector.load %arg2[%c0_15, %c0_16] : memref<8x72xbf16, #tpu.memory_space<vmem>>, vector<8x72xbf16>
    %cst_17 = arith.constant dense<0.000000e+00> : vector<8x256xf32>
    %58 = tpu.matmul %57, %56, %cst_17 {dimension_numbers = #tpu.dot_dimension_numbers<[1], [0], [0], [1], [0, 0, 1, 1], [], []>} : vector<8x72xbf16>, vector<72x256xbf16>, vector<8x256xf32> -> vector<8x256xf32>
    %c0_18 = arith.constant 0 : index
    %c0_19 = arith.constant 0 : index
    %59 = vector.load %arg3[%c0_18, %c0_19] : memref<8x1xf32, #tpu.memory_space<vmem>>, vector<8x1xf32>
    %60 = vector.broadcast %59 : vector<8x1xf32> to vector<8x256xf32>
    %61 = arith.addf %58, %60 : vector<8x256xf32>
    %cst_20 = arith.constant 0.000000e+00 : f32
    %62 = vector.broadcast %cst_20 : f32 to vector<8x256xf32>
    %63 = arith.maximumf %61, %62 : vector<8x256xf32>
    %c15_i32_21 = arith.constant 15 : i32
    %64 = vector.broadcast %c15_i32_21 : i32 to vector<1x256xi32>
    %65 = arith.cmpi ne, %18, %64 : vector<1x256xi32>
    %cst_22 = arith.constant 0.000000e+00 : f32
    %66 = vector.shape_cast %65 : vector<1x256xi1> to vector<1x256xi1>
    %67 = vector.broadcast %66 : vector<1x256xi1> to vector<8x256xi1>
    %68 = vector.broadcast %cst_22 : f32 to vector<8x256xf32>
    %69 = arith.select %67, %63, %68 : vector<8x256xi1>, vector<8x256xf32>
    %c0_i32_23 = arith.constant 0 : i32
    %70 = vector.broadcast %c0_i32_23 : i32 to vector<1x256xi32>
    %71 = arith.cmpi ne, %18, %70 : vector<1x256xi32>
    %cst_24 = arith.constant 0.000000e+00 : f32
    %72 = vector.shape_cast %71 : vector<1x256xi1> to vector<1x256xi1>
    %73 = vector.broadcast %72 : vector<1x256xi1> to vector<8x256xi1>
    %74 = vector.broadcast %cst_24 : f32 to vector<8x256xf32>
    %75 = arith.select %73, %63, %74 : vector<8x256xi1>, vector<8x256xf32>
    %cst_25 = arith.constant 0.000000e+00 : f32
    %76 = vector.broadcast %cst_25 : f32 to vector<8x17xf32>
    %77 = vector.extract_strided_slice %69 {offsets = [0, 0], sizes = [8, 239], strides = [1, 1]} : vector<8x256xf32> to vector<8x239xf32>
    %78 = tpu.concatenate %76, %77 in 1 : vector<8x17xf32>, vector<8x239xf32> -> vector<8x256xf32>
    %cst_26 = arith.constant 0.000000e+00 : f32
    %79 = vector.broadcast %cst_26 : f32 to vector<8x16xf32>
    %80 = vector.extract_strided_slice %63 {offsets = [0, 0], sizes = [8, 240], strides = [1, 1]} : vector<8x256xf32> to vector<8x240xf32>
    %81 = tpu.concatenate %79, %80 in 1 : vector<8x16xf32>, vector<8x240xf32> -> vector<8x256xf32>
    %cst_27 = arith.constant 0.000000e+00 : f32
    %82 = vector.broadcast %cst_27 : f32 to vector<8x15xf32>
    %83 = vector.extract_strided_slice %75 {offsets = [0, 0], sizes = [8, 241], strides = [1, 1]} : vector<8x256xf32> to vector<8x241xf32>
    %84 = tpu.concatenate %82, %83 in 1 : vector<8x15xf32>, vector<8x241xf32> -> vector<8x256xf32>
    %cst_28 = arith.constant 0.000000e+00 : f32
    %85 = vector.broadcast %cst_28 : f32 to vector<8x1xf32>
    %86 = vector.extract_strided_slice %69 {offsets = [0, 0], sizes = [8, 255], strides = [1, 1]} : vector<8x256xf32> to vector<8x255xf32>
    %87 = tpu.concatenate %85, %86 in 1 : vector<8x1xf32>, vector<8x255xf32> -> vector<8x256xf32>
    %cst_29 = arith.constant 0.000000e+00 : f32
    %88 = vector.broadcast %cst_29 : f32 to vector<8x1xf32>
    %89 = vector.extract_strided_slice %75 {offsets = [0, 1], sizes = [8, 255], strides = [1, 1]} : vector<8x256xf32> to vector<8x255xf32>
    %90 = tpu.concatenate %89, %88 in 1 : vector<8x255xf32>, vector<8x1xf32> -> vector<8x256xf32>
    %cst_30 = arith.constant 0.000000e+00 : f32
    %91 = vector.broadcast %cst_30 : f32 to vector<8x15xf32>
    %92 = vector.extract_strided_slice %69 {offsets = [0, 15], sizes = [8, 241], strides = [1, 1]} : vector<8x256xf32> to vector<8x241xf32>
    %93 = tpu.concatenate %92, %91 in 1 : vector<8x241xf32>, vector<8x15xf32> -> vector<8x256xf32>
    %cst_31 = arith.constant 0.000000e+00 : f32
    %94 = vector.broadcast %cst_31 : f32 to vector<8x16xf32>
    %95 = vector.extract_strided_slice %63 {offsets = [0, 16], sizes = [8, 240], strides = [1, 1]} : vector<8x256xf32> to vector<8x240xf32>
    %96 = tpu.concatenate %95, %94 in 1 : vector<8x240xf32>, vector<8x16xf32> -> vector<8x256xf32>
    %cst_32 = arith.constant 0.000000e+00 : f32
    %97 = vector.broadcast %cst_32 : f32 to vector<8x17xf32>
    %98 = vector.extract_strided_slice %75 {offsets = [0, 17], sizes = [8, 239], strides = [1, 1]} : vector<8x256xf32> to vector<8x239xf32>
    %99 = tpu.concatenate %98, %97 in 1 : vector<8x239xf32>, vector<8x17xf32> -> vector<8x256xf32>
    %100 = tpu.concatenate %78, %81, %84, %87, %63, %90, %93, %96, %99 in 0 : vector<8x256xf32>, vector<8x256xf32>, vector<8x256xf32>, vector<8x256xf32>, vector<8x256xf32>, vector<8x256xf32>, vector<8x256xf32>, vector<8x256xf32>, vector<8x256xf32> -> vector<72x256xf32>
    %101 = arith.truncf %100 : vector<72x256xf32> to vector<72x256xbf16>
    %c0_33 = arith.constant 0 : index
    %c0_34 = arith.constant 0 : index
    %102 = vector.load %arg4[%c0_33, %c0_34] : memref<8x72xbf16, #tpu.memory_space<vmem>>, vector<8x72xbf16>
    %cst_35 = arith.constant dense<0.000000e+00> : vector<8x256xf32>
    %103 = tpu.matmul %102, %101, %cst_35 {dimension_numbers = #tpu.dot_dimension_numbers<[1], [0], [0], [1], [0, 0, 1, 1], [], []>} : vector<8x72xbf16>, vector<72x256xbf16>, vector<8x256xf32> -> vector<8x256xf32>
    %c0_36 = arith.constant 0 : index
    %c0_37 = arith.constant 0 : index
    %104 = vector.load %arg5[%c0_36, %c0_37] : memref<8x1xf32, #tpu.memory_space<vmem>>, vector<8x1xf32>
    %105 = vector.broadcast %104 : vector<8x1xf32> to vector<8x256xf32>
    %106 = arith.addf %103, %105 : vector<8x256xf32>
    %cst_38 = arith.constant 1.000000e-01 : f32
    %107 = vector.broadcast %cst_38 : f32 to vector<8x256xf32>
    %108 = arith.mulf %106, %107 : vector<8x256xf32>
    %109 = arith.addf %108, %1 : vector<8x256xf32>
    %c0_39 = arith.constant 0 : index
    %c0_40 = arith.constant 0 : index
    %c0_41 = arith.constant 0 : index
    %110 = vector.load %arg6[%c0_39, %c0_40, %c0_41] : memref<1x8x256xf32, #tpu.memory_space<vmem>>, vector<1x8x256xf32>
    %111 = vector.shape_cast %110 : vector<1x8x256xf32> to vector<8x256xf32>
    %112 = vector.shape_cast %109 : vector<8x256xf32> to vector<1x8x256xf32>
    tpu.vector_store %arg6[%c0_39, %c0_40, %c0_41], %112 {strides = array<i32>} : memref<1x8x256xf32, #tpu.memory_space<vmem>>, vector<1x8x256xf32>,
    return
  }
  func.func @transform_0(%arg0: i32) -> (i32, i32, i32) {
    %c0_i32 = arith.constant 0 : i32
    %c0_i32_0 = arith.constant 0 : i32
    %c0_i32_1 = arith.constant 0 : i32
    return %arg0, %c0_i32, %c0_i32_0 : i32, i32, i32
  }
  func.func @transform_1(%arg0: i32) -> (i32, i32) {
    %c0_i32 = arith.constant 0 : i32
    %c0_i32_0 = arith.constant 0 : i32
    %c0_i32_1 = arith.constant 0 : i32
    return %c0_i32, %c0_i32_0 : i32, i32
  }
  func.func @transform_2(%arg0: i32) -> (i32, i32) {
    %c0_i32 = arith.constant 0 : i32
    %c0_i32_0 = arith.constant 0 : i32
    %c0_i32_1 = arith.constant 0 : i32
    return %c0_i32, %c0_i32_0 : i32, i32
  }
  func.func @transform_3(%arg0: i32) -> (i32, i32) {
    %c0_i32 = arith.constant 0 : i32
    %c0_i32_0 = arith.constant 0 : i32
    %c0_i32_1 = arith.constant 0 : i32
    return %c0_i32, %c0_i32_0 : i32, i32
  }
  func.func @transform_4(%arg0: i32) -> (i32, i32) {
    %c0_i32 = arith.constant 0 : i32
    %c0_i32_0 = arith.constant 0 : i32
    %c0_i32_1 = arith.constant 0 : i32
    return %c0_i32, %c0_i32_0 : i32, i32
  }
  func.func @transform_5(%arg0: i32) -> (i32, i32, i32) {
    %c0_i32 = arith.constant 0 : i32
    %c0_i32_0 = arith.constant 0 : i32
    %c0_i32_1 = arith.constant 0 : i32
    return %arg0, %c0_i32, %c0_i32_0 : i32, i32, i32
  }
}

</mosaic_0001>

<llo_original>
// kernel: rb_forward.1
$region0: #{rb_forward.1}
  #allocation0 [shape = 'u32[]', space=smem, size = 0x4, offset = 0x4, fixed_abs, tag = 'smem constant byte address 0x4 - core index']
  #allocation1 [shape = 'u32[144,128]{1,0:T(1,128)}', space=vmem, size = 0x12000, scoped, tag = 'internal scratch']
  %s0 = inlined_call_operand.vmem [shape: f32[2,8,256], index: 0, kind: input, shape index: {}]
  %s1 = inlined_call_operand.vmem [shape: bf16[8,72], index: 1, kind: input, shape index: {}]
  %s2 = inlined_call_operand.vmem [shape: f32[8,1], index: 2, kind: input, shape index: {}]
  %s3 = inlined_call_operand.vmem [shape: bf16[8,72], index: 3, kind: input, shape index: {}]
  %s4 = inlined_call_operand.vmem [shape: f32[8,1], index: 4, kind: input, shape index: {}]
  %s5 = inlined_call_operand.vmem [shape: f32[2,8,256], index: 5, kind: output, shape index: {}]
  %s6 = sld [smem:[#allocation0]]
  $region53: #{rb_forward.1} parent=0
    _
  %s8 = ssub.s32 1, %s6
  %s9 = scalar_select 0, %s8, %s6
  loop: start=0, step=1, limit=4
  $region2: #{rb_forward.1} parent=0 // loop_pre_header
    _
  $region3: #{rb_forward.1} parent=0 // loop_header
    %s11 = sphi 0, %s15
    %p12 = scmp.ge.s32.totalorder %s11, 4
    %s21 = sphi 0, %s23
    %s24 = sphi 0, %s21
    %s25 = sphi 0, %s24
    %s41 = sphi 0, %s25
    %s45 = sphi 0, %s45
    %s47 = sphi 0, %s45
    %s48 = sphi 0, %s47
    %s62 = sphi 0, %s48
    %s66 = sphi 0, %s66
    %s68 = sphi 0, %s66
    %s69 = sphi 0, %s68
    %s83 = sphi 0, %s69
    %s87 = sphi 0, %s87
    %s89 = sphi 0, %s87
    %s90 = sphi 0, %s89
    %s104 = sphi 0, %s90
    %s108 = sphi 0, %s108
    %s110 = sphi 0, %s108
    %s111 = sphi 0, %s110
    %s125 = sphi 0, %s111
    %s131 = sphi 0, %s133
    %s134 = sphi 0, %s131
    %s135 = sphi 0, %s134
    %s151 = sphi 0, %s135
  $region4: #{rb_forward.1} parent=0 // loop_header_branch
    %14 = sbr.rel (%p12) target = $region8
  $region5: #{rb_forward.1} parent=0 // loop_body
    %s16 = ssub.s32 %s11, 1
    %s17 = ssub.s32 %s11, 2
    %s18 = sadd.s32 %s11, 1
    %s19 = ssub.s32 %s11, %s18
    %p20 = scmp.eq.s32.totalorder %s19, 0
    %s22 = sadd.s32 %s21, 1
    %s23 = scalar_select %p20, %s21, %s22
    %p26 = pneg %p20
    %p27 = scmp.eq.s32.totalorder %s11, 1
    %p28 = por %p26, %p27
    %p29 = scmp.ne.s32.totalorder %s21, %s24
    %p30 = scmp.eq.s32.totalorder %s11, 0
    %p31 = por %p29, %p30
    %p32 = scmp.ne.s32.totalorder %s21, %s24
    %p33 = scmp.eq.s32.totalorder %s16, 1
    %p34 = por %p32, %p33
    %p35 = scmp.ne.s32.totalorder %s24, %s25
    %p36 = scmp.eq.s32.totalorder %s16, 0
    %p37 = por %p35, %p36
    %p38 = scmp.ne.s32.totalorder %s24, %s25
    %p39 = scmp.eq.s32.totalorder %s17, 1
    %p40 = por %p38, %p39
    %p42 = scmp.ne.s32.totalorder %s25, %s41
    %p43 = scmp.eq.s32.totalorder %s17, 0
    %p44 = por %p42, %p43
    %s46 = sadd.s32 %s45, 1
    %p49 = scmp.eq.s32.totalorder %s11, 1
    %p50 = scmp.ne.s32.totalorder %s45, %s47
    %p51 = scmp.eq.s32.totalorder %s11, 0
    %p52 = por %p50, %p51
    %p53 = scmp.ne.s32.totalorder %s45, %s47
    %p54 = scmp.eq.s32.totalorder %s16, 1
    %p55 = por %p53, %p54
    %p56 = scmp.ne.s32.totalorder %s47, %s48
    %p57 = scmp.eq.s32.totalorder %s16, 0
    %p58 = por %p56, %p57
    %p59 = scmp.ne.s32.totalorder %s47, %s48
    %p60 = scmp.eq.s32.totalorder %s17, 1
    %p61 = por %p59, %p60
    %p63 = scmp.ne.s32.totalorder %s48, %s62
    %p64 = scmp.eq.s32.totalorder %s17, 0
    %p65 = por %p63, %p64
    %s67 = sadd.s32 %s66, 1
    %p70 = scmp.eq.s32.totalorder %s11, 1
    %p71 = scmp.ne.s32.totalorder %s66, %s68
    %p72 = scmp.eq.s32.totalorder %s11, 0
    %p73 = por %p71, %p72
    %p74 = scmp.ne.s32.totalorder %s66, %s68
    %p75 = scmp.eq.s32.totalorder %s16, 1
    %p76 = por %p74, %p75
    %p77 = scmp.ne.s32.totalorder %s68, %s69
    %p78 = scmp.eq.s32.totalorder %s16, 0
    %p79 = por %p77, %p78
    %p80 = scmp.ne.s32.totalorder %s68, %s69
    %p81 = scmp.eq.s32.totalorder %s17, 1
    %p82 = por %p80, %p81
    %p84 = scmp.ne.s32.totalorder %s69, %s83
    %p85 = scmp.eq.s32.totalorder %s17, 0
    %p86 = por %p84, %p85
    %s88 = sadd.s32 %s87, 1
    %p91 = scmp.eq.s32.totalorder %s11, 1
    %p92 = scmp.ne.s32.totalorder %s87, %s89
    %p93 = scmp.eq.s32.totalorder %s11, 0
    %p94 = por %p92, %p93
    %p95 = scmp.ne.s32.totalorder %s87, %s89
    %p96 = scmp.eq.s32.totalorder %s16, 1
    %p97 = por %p95, %p96
    %p98 = scmp.ne.s32.totalorder %s89, %s90
    %p99 = scmp.eq.s32.totalorder %s16, 0
    %p100 = por %p98, %p99
    %p101 = scmp.ne.s32.totalorder %s89, %s90
    %p102 = scmp.eq.s32.totalorder %s17, 1
    %p103 = por %p101, %p102
    %p105 = scmp.ne.s32.totalorder %s90, %s104
    %p106 = scmp.eq.s32.totalorder %s17, 0
    %p107 = por %p105, %p106
    %s109 = sadd.s32 %s108, 1
    %p112 = scmp.eq.s32.totalorder %s11, 1
    %p113 = scmp.ne.s32.totalorder %s108, %s110
    %p114 = scmp.eq.s32.totalorder %s11, 0
    %p115 = por %p113, %p114
    %p116 = scmp.ne.s32.totalorder %s108, %s110
    %p117 = scmp.eq.s32.totalorder %s16, 1
    %p118 = por %p116, %p117
    %p119 = scmp.ne.s32.totalorder %s110, %s111
    %p120 = scmp.eq.s32.totalorder %s16, 0
    %p121 = por %p119, %p120
    %p122 = scmp.ne.s32.totalorder %s110, %s111
    %p123 = scmp.eq.s32.totalorder %s17, 1
    %p124 = por %p122, %p123
    %p126 = scmp.ne.s32.totalorder %s111, %s125
    %p127 = scmp.eq.s32.totalorder %s17, 0
    %p128 = por %p126, %p127
    %s129 = ssub.s32 %s11, %s18
    %p130 = scmp.eq.s32.totalorder %s129, 0
    %s132 = sadd.s32 %s131, 1
    %s133 = scalar_select %p130, %s131, %s132
    %p136 = pneg %p130
    %p137 = scmp.eq.s32.totalorder %s11, 1
    %p138 = por %p136, %p137
    %p139 = scmp.ne.s32.totalorder %s131, %s134
    %p140 = scmp.eq.s32.totalorder %s11, 0
    %p141 = por %p139, %p140
    %p142 = scmp.ne.s32.totalorder %s131, %s134
    %p143 = scmp.eq.s32.totalorder %s16, 1
    %p144 = por %p142, %p143
    %p145 = scmp.ne.s32.totalorder %s134, %s135
    %p146 = scmp.eq.s32.totalorder %s16, 0
    %p147 = por %p145, %p146
    %p148 = scmp.ne.s32.totalorder %s134, %s135
    %p149 = scmp.eq.s32.totalorder %s17, 1
    %p150 = por %p148, %p149
    %p152 = scmp.ne.s32.totalorder %s135, %s151
    %p153 = scmp.eq.s32.totalorder %s17, 0
    %p154 = por %p152, %p153
    %p155 = scmp.le.s32.totalorder 1, %s11
    %p156 = scmp.lt.s32.totalorder %s11, 3
    %p157 = pnand %p155, %p156
    %p158 = pneg %p157
    // Predicated region
    $region9: #{rb_forward.1} parent=5 // pred_check
      _
    $region10: #{rb_forward.1} parent=5 // pred_check_branch
      %160 = sbr.rel (%p157) target = $region12
    $region11: #{rb_forward.1} parent=5 // pred_region
      %s161 = ssub.s32 %s11, 1
      // Predicated region
      $region13: #{rb_forward.1} parent=11 // pred_check
        %p162 = pneg %p58
      $region14: #{rb_forward.1} parent=11 // pred_check_branch
        %164 = sbr.rel (%p162) target = $region16
      $region15: #{rb_forward.1} parent=11 // pred_region
        _
      $region16: #{rb_forward.1} parent=11 // pred_fallthru
        _
      // Predicated region
      $region17: #{rb_forward.1} parent=11 // pred_check
        %p165 = pneg %p79
      $region18: #{rb_forward.1} parent=11 // pred_check_branch
        %167 = sbr.rel (%p165) target = $region20
      $region19: #{rb_forward.1} parent=11 // pred_region
        _
      $region20: #{rb_forward.1} parent=11 // pred_fallthru
        _
      // Predicated region
      $region21: #{rb_forward.1} parent=11 // pred_check
        %p168 = pneg %p100
      $region22: #{rb_forward.1} parent=11 // pred_check_branch
        %170 = sbr.rel (%p168) target = $region24
      $region23: #{rb_forward.1} parent=11 // pred_region
        _
      $region24: #{rb_forward.1} parent=11 // pred_fallthru
        _
      // Predicated region
      $region25: #{rb_forward.1} parent=11 // pred_check
        %p171 = pneg %p121
      $region26: #{rb_forward.1} parent=11 // pred_check_branch
        %173 = sbr.rel (%p171) target = $region28
      $region27: #{rb_forward.1} parent=11 // pred_region
        _
      $region28: #{rb_forward.1} parent=11 // pred_fallthru
        _
    $region12: #{rb_forward.1} parent=5 // pred_fallthru
      _
    %p174 = scmp.lt.s32.totalorder %s11, 2
    // Predicated region
    $region29: #{rb_forward.1} parent=5 // pred_check
      %p175 = pneg %p174
    $region30: #{rb_forward.1} parent=5 // pred_check_branch
      %177 = sbr.rel (%p175) target = $region32
    $region31: #{rb_forward.1} parent=5 // pred_region
      // Predicated region
      $region33: #{rb_forward.1} parent=31 // pred_check
        %p178 = pneg %p31
      $region34: #{rb_forward.1} parent=31 // pred_check_branch
        %180 = sbr.rel (%p178) target = $region36
      $region35: #{rb_forward.1} parent=31 // pred_region
        %p181 = scmp.lt.s32.totalorder %s11, 1
        %s182 = scalar_select %p181, %s11, 1
        %s183 = smul.addr %s182, 2
        %s184 = smul.addr %s183, 8
        %s185 = scalar_lea.vmem %s0, %s184
      $region36: #{rb_forward.1} parent=31 // pred_fallthru
        _
    $region32: #{rb_forward.1} parent=5 // pred_fallthru
      _
    %p186 = scmp.le.s32.totalorder 1, %s11
    %p187 = scmp.lt.s32.totalorder %s11, 3
    %p188 = pnand %p186, %p187
    %p189 = pneg %p188
    // Predicated region
    $region37: #{rb_forward.1} parent=5 // pred_check
      _
    $region38: #{rb_forward.1} parent=5 // pred_check_branch
      %191 = sbr.rel (%p188) target = $region40
    $region39: #{rb_forward.1} parent=5 // pred_region
      %s192 = ssub.s32 %s11, 1
      %p193 = scmp.lt.s32.totalorder %s16, 1
      %s194 = scalar_select %p193, %s16, 1
      %s195 = smul.addr %s194, 2
      %s196 = smul.addr %s195, 8
      %s197 = scalar_lea.vmem %s0, %s196
      %p198 = pneg %p37
      %p199 = pneg %p34
      %p200 = pneg %p58
      %p201 = pneg %p55
      %p202 = pneg %p79
      %p203 = pneg %p76
      %p204 = pneg %p100
      %p205 = pneg %p97
      %p206 = pneg %p121
      %p207 = pneg %p118
      %p208 = pneg %p147
      %p209 = pneg %p144
      %p210 = scmp.lt.s32.totalorder %s16, 1
      %s211 = scalar_select %p210, %s16, 1
      %s212 = smul.addr %s211, 2
      %s213 = smul.addr %s212, 8
      %s214 = scalar_lea.vmem %s5, %s213
      %p215 = scmp.lt.s32.totalorder %s16, 1
      %s216 = scalar_select %p215, %s16, 1
      %s217 = smul.addr %s216, 2
      %s218 = smul.addr %s217, 8
      %s219 = scalar_lea.vmem %s0, %s218
      %p220 = scmp.lt.s32.totalorder %s16, 1
      %s221 = scalar_select %p220, %s16, 1
      %s222 = smul.addr %s221, 2
      %s223 = smul.addr %s222, 8
      %s224 = scalar_lea.vmem %s5, %s223
      %v226 = vld [vmem:[%s219] sm:$0xff]
      %v227 = vld [vmem:[%s219 + $0x8] sm:$0xff]
      %v228 = vlaneseq
      %v229 = vand.u32 %v228, 127
      %v230 = vadd.s32 %v229, 128
      %vm231 = vcmp.lt.s32.totalorder %v229, 0
      %v232 = vsub.s32 0, %v229
      %v233 = vsel %vm231, %v232, %v229
      %v234 = vshrl.u32 %v233, 4
      %v235 = vand.u32 %v233, 15
      %v236 = vsub.s32 0, %v235
      %v237 = vsel %vm231, %v236, %v235
      %vm238 = vcmp.lt.s32.totalorder %v230, 0
      %v239 = vsub.s32 0, %v230
      %v240 = vsel %vm238, %v239, %v230
      %v241 = vshrl.u32 %v240, 4
      %v242 = vand.u32 %v240, 15
      %v243 = vsub.s32 0, %v242
      %v244 = vsel %vm238, %v243, %v242
      %vm245 = vcmp.ne.s32.totalorder %v237, 0
      %vm246 = vcmp.ne.s32.totalorder %v244, 0
      %vm247 = vcmp.lt.s32.totalorder %v237, 0
      %vm248 = vcmp.lt.s32.totalorder %v244, 0
      %vm249 = vmand %vm247, %vm245
      %vm250 = vmand %vm248, %vm246
      %v251 = vadd.s32 %v237, 16
      %v252 = vadd.s32 %v244, 16
      %v253 = vsel %vm249, %v251, %v237
      %v254 = vsel %vm250, %v252, %v244
      %vm255 = vcmp.ne.s32.totalorder %v253, 15
      %vm256 = vcmp.ne.s32.totalorder %v254, 15
      %v257 = vsel %vm255, 1, 0
      %v258 = vsel %vm256, 1, 0
      %vm259 = vcmp.eq.s32.totalorder %v257, 1
      %vm260 = vcmp.eq.s32.totalorder %v258, 1
      %v261 = vsel %vm259, %v226, 0.0
      %v262 = vsel %vm260, %v227, 0.0
      %vm263 = vcmp.ne.s32.totalorder %v253, 0
      %vm264 = vcmp.ne.s32.totalorder %v254, 0
      %v265 = vsel %vm263, 1, 0
      %v266 = vsel %vm264, 1, 0
      %vm267 = vcmp.eq.s32.totalorder %v265, 1
      %vm268 = vcmp.eq.s32.totalorder %v266, 1
      %v269 = vsel %vm267, %v226, 0.0
      %v270 = vsel %vm268, %v227, 0.0
      %273 = vrot.lane.b32.xlu0 %v261, 17
      %v274 = vpop.permute.xlu0 %273
      %275 = vrot.lane.b32.xlu0 %v262, 17
      %v276 = vpop.permute.xlu0 %275
      %vm277 = vcmask 138240
      %v278 = vsel %vm277, %v274, %v276
      %v281 = vsel %vm277, 0.0, %v274
      %284 = vrot.lane.b32.xlu0 %v226, 16
      %v285 = vpop.permute.xlu0 %284
      %286 = vrot.lane.b32.xlu0 %v227, 16
      %v287 = vpop.permute.xlu0 %286
      %vm288 = vcmask 130048
      %v289 = vsel %vm288, %v285, %v287
      %v292 = vsel %vm288, 0.0, %v285
      %295 = vrot.lane.b32.xlu0 %v269, 15
      %v296 = vpop.permute.xlu0 %295
      %297 = vrot.lane.b32.xlu0 %v270, 15
      %v298 = vpop.permute.xlu0 %297
      %vm299 = vcmask 121856
      %v300 = vsel %vm299, %v296, %v298
      %v303 = vsel %vm299, 0.0, %v296
      %304 = vrot.lane.b32.xlu0 %v261, 1
      %v305 = vpop.permute.xlu0 %304
      %306 = vrot.lane.b32.xlu0 %v262, 1
      %v307 = vpop.permute.xlu0 %306
      %vm308 = vcmask 7168
      %v309 = vsel %vm308, %v305, %v307
      %v312 = vsel %vm308, 0.0, %v305
      %313 = vrot.lane.b32.xlu0 %v269, 127
      %v314 = vpop.permute.xlu0 %313
      %315 = vrot.lane.b32.xlu0 %v270, 127
      %v316 = vpop.permute.xlu0 %315
      %vm317 = vcmask 1039360
      %v318 = vsel %vm317, %v314, %v316
      %v321 = vsel %vm317, %v316, 0.0
      %322 = vrot.lane.b32.xlu0 %v261, 113
      %v323 = vpop.permute.xlu0 %322
      %324 = vrot.lane.b32.xlu0 %v262, 113
      %v325 = vpop.permute.xlu0 %324
      %vm326 = vcmask 924672
      %v327 = vsel %vm326, %v323, %v325
      %v330 = vsel %vm326, %v325, 0.0
      %331 = vrot.lane.b32.xlu0 %v226, 112
      %v332 = vpop.permute.xlu0 %331
      %333 = vrot.lane.b32.xlu0 %v227, 112
      %v334 = vpop.permute.xlu0 %333
      %vm335 = vcmask 916480
      %v336 = vsel %vm335, %v332, %v334
      %v339 = vsel %vm335, %v334, 0.0
      %340 = vrot.lane.b32.xlu0 %v269, 111
      %v341 = vpop.permute.xlu0 %340
      %342 = vrot.lane.b32.xlu0 %v270, 111
      %v343 = vpop.permute.xlu0 %342
      %vm344 = vcmask 908288
      %v345 = vsel %vm344, %v341, %v343
      %v348 = vsel %vm344, %v343, 0.0
      %v349 = vpack.c.bf16 %v292, %v281
      %v350 = vpack.c.bf16 %v289, %v278
      %v351 = vpack.c.bf16 %v312, %v303
      %v352 = vpack.c.bf16 %v309, %v300
      %v353 = vpack.c.bf16 %v318, %v226
      %v354 = vpack.c.bf16 %v321, %v227
      %v355 = vpack.c.bf16 %v336, %v327
      %v356 = vpack.c.bf16 %v339, %v330
      %v357 = vpack.c.bf16 %v345, %v345
      %v358 = vpack.c.bf16 %v348, %v348
      %v359 = vld [vmem:[%s1] sm:$0xf]
      %v360 = vld [vmem:[%s2] sm:$0xff]
      %362 = vset.pattern.permute.xlu0 0
      %363 = vperm.xlu0 %362, %v360
      %v364 = vpop.permute.xlu0 %363
      %vm366 = vcmask 588800
      %v368 = vsel %vm366, %v359, 0
      %vm370 = vcmask 1043456
      %v372 = vsel %vm370, %v357, 0
      %v375 = vsel %vm370, %v358, 0
      %377 = vmatprep.subr.bf16.mxu0 %v350
      %378 = vmatpush1.bf16.msra.mxu0 %v349
      %379 = vmatprep.subr.bf16.mxu0 %v352
      %380 = vmatpush1.bf16.msra.mxu0 %v351
      %381 = vmatprep.subr.bf16.mxu0 %v354
      %382 = vmatpush1.bf16.msra.mxu0 %v353
      %383 = vmatprep.subr.bf16.mxu0 %v356
      %384 = vmatpush1.bf16.msra.mxu0 %v355
      %385 = vmatprep.subr.bf16.mxu0 %v375
      %386 = vmatpush1.bf16.msra.mxu0 %v372
      %387 = vmatprep.subr.bf16.mxu0 0
      %388 = vmatpush1.bf16.msra.mxu0 0
      %389 = vmatprep.subr.bf16.mxu0 0
      %390 = vmatpush1.bf16.msra.mxu0 0
      %391 = vmatprep.subr.bf16.mxu0 0
      %392 = vmatpush1.bf16.msra.mxu0 0
      %393 = vmatprep.subr.bf16.mxu0 0
      %394 = vmatpush1.bf16.msra.mxu0 0
      %395 = vmatprep.subr.bf16.mxu0 0
      %396 = vmatpush1.bf16.msra.mxu0 0
      %397 = vmatprep.subr.bf16.mxu0 0
      %398 = vmatpush1.bf16.msra.mxu0 0
      %399 = vmatprep.subr.bf16.mxu0 0
      %400 = vmatpush1.bf16.msra.mxu0 0
      %401 = vmatprep.subr.bf16.mxu0 0
      %402 = vmatpush1.bf16.msra.mxu0 0
      %403 = vmatprep.subr.bf16.mxu0 0
      %404 = vmatpush1.bf16.msra.mxu0 0
      %405 = vmatprep.subr.bf16.mxu0 0
      %406 = vmatpush1.bf16.msra.mxu0 0
      %407 = vmatprep.subr.bf16.mxu0 0
      %408 = vmatpush1.bf16.msra.mxu0 0
      %409 = vmatprep.mubr.bf16.mxu0 0
      %410 = vmatmul.mubr.bf16.gmra.mrb[0].mxu0 %v368
      %v411 = vpop.f32.mrb[0].mxu0
      %v412 = vadd.f32 %v364, %v411
      %v413 = vpop.f32.mrb[0].mxu0
      %v414 = vadd.f32 %v364, %v413
      %v415 = vpop.f32.mrb[0].mxu0
      %v416 = vpop.f32.mrb[0].mxu0
      %417 = vdwg.mxu0
      %v418 = vmax.f32 %v412, 0.0
      %v419 = vmax.f32 %v414, 0.0
      %v420 = vsel %vm259, %v418, 0.0
      %v421 = vsel %vm260, %v419, 0.0
      %v422 = vsel %vm267, %v418, 0.0
      %v423 = vsel %vm268, %v419, 0.0
      %426 = vrot.lane.b32.xlu0 %v420, 17
      %v427 = vpop.permute.xlu0 %426
      %428 = vrot.lane.b32.xlu0 %v421, 17
      %v429 = vpop.permute.xlu0 %428
      %v430 = vsel %vm277, %v427, %v429
      %v433 = vsel %vm277, 0.0, %v427
      %436 = vrot.lane.b32.xlu0 %v418, 16
      %v437 = vpop.permute.xlu0 %436
      %438 = vrot.lane.b32.xlu0 %v419, 16
      %v439 = vpop.permute.xlu0 %438
      %v440 = vsel %vm288, %v437, %v439
      %v443 = vsel %vm288, 0.0, %v437
      %446 = vrot.lane.b32.xlu0 %v422, 15
      %v447 = vpop.permute.xlu0 %446
      %448 = vrot.lane.b32.xlu0 %v423, 15
      %v449 = vpop.permute.xlu0 %448
      %v450 = vsel %vm299, %v447, %v449
      %v453 = vsel %vm299, 0.0, %v447
      %454 = vrot.lane.b32.xlu0 %v420, 1
      %v455 = vpop.permute.xlu0 %454
      %456 = vrot.lane.b32.xlu0 %v421, 1
      %v457 = vpop.permute.xlu0 %456
      %v458 = vsel %vm308, %v455, %v457
      %v461 = vsel %vm308, 0.0, %v455
      %462 = vrot.lane.b32.xlu0 %v422, 127
      %v463 = vpop.permute.xlu0 %462
      %464 = vrot.lane.b32.xlu0 %v423, 127
      %v465 = vpop.permute.xlu0 %464
      %v466 = vsel %vm317, %v463, %v465
      %v469 = vsel %vm317, %v465, 0.0
      %470 = vrot.lane.b32.xlu0 %v420, 113
      %v471 = vpop.permute.xlu0 %470
      %472 = vrot.lane.b32.xlu0 %v421, 113
      %v473 = vpop.permute.xlu0 %472
      %v474 = vsel %vm326, %v471, %v473
      %v477 = vsel %vm326, %v473, 0.0
      %478 = vrot.lane.b32.xlu0 %v418, 112
      %v479 = vpop.permute.xlu0 %478
      %480 = vrot.lane.b32.xlu0 %v419, 112
      %v481 = vpop.permute.xlu0 %480
      %v482 = vsel %vm335, %v479, %v481
      %v485 = vsel %vm335, %v481, 0.0
      %486 = vrot.lane.b32.xlu0 %v422, 111
      %v487 = vpop.permute.xlu0 %486
      %488 = vrot.lane.b32.xlu0 %v423, 111
      %v489 = vpop.permute.xlu0 %488
      %v490 = vsel %vm344, %v487, %v489
      %v493 = vsel %vm344, %v489, 0.0
      %v494 = vpack.c.bf16 %v443, %v433
      %v495 = vpack.c.bf16 %v440, %v430
      %v496 = vpack.c.bf16 %v461, %v453
      %v497 = vpack.c.bf16 %v458, %v450
      %v498 = vpack.c.bf16 %v466, %v418
      %v499 = vpack.c.bf16 %v469, %v419
      %v500 = vpack.c.bf16 %v482, %v474
      %v501 = vpack.c.bf16 %v485, %v477
      %v502 = vpack.c.bf16 %v490, %v490
      %v503 = vpack.c.bf16 %v493, %v493
      %v504 = vld [vmem:[%s3] sm:$0xf]
      %v505 = vld [vmem:[%s4] sm:$0xff]
      %507 = vset.pattern.permute.xlu0 0
      %508 = vperm.xlu0 %507, %v505
      %v509 = vpop.permute.xlu0 %508
      %v512 = vsel %vm366, %v504, 0
      %v515 = vsel %vm370, %v502, 0
      %v518 = vsel %vm370, %v503, 0
      %520 = vmatprep.subr.bf16.mxu0 %v495
      %521 = vmatpush1.bf16.msra.mxu0 %v494
      %522 = vmatprep.subr.bf16.mxu0 %v497
      %523 = vmatpush1.bf16.msra.mxu0 %v496
      %524 = vmatprep.subr.bf16.mxu0 %v499
      %525 = vmatpush1.bf16.msra.mxu0 %v498
      %526 = vmatprep.subr.bf16.mxu0 %v501
      %527 = vmatpush1.bf16.msra.mxu0 %v500
      %528 = vmatprep.subr.bf16.mxu0 %v518
      %529 = vmatpush1.bf16.msra.mxu0 %v515
      %530 = vmatprep.subr.bf16.mxu0 0
      %531 = vmatpush1.bf16.msra.mxu0 0
      %532 = vmatprep.subr.bf16.mxu0 0
      %533 = vmatpush1.bf16.msra.mxu0 0
      %534 = vmatprep.subr.bf16.mxu0 0
      %535 = vmatpush1.bf16.msra.mxu0 0
      %536 = vmatprep.subr.bf16.mxu0 0
      %537 = vmatpush1.bf16.msra.mxu0 0
      %538 = vmatprep.subr.bf16.mxu0 0
      %539 = vmatpush1.bf16.msra.mxu0 0
      %540 = vmatprep.subr.bf16.mxu0 0
      %541 = vmatpush1.bf16.msra.mxu0 0
      %542 = vmatprep.subr.bf16.mxu0 0
      %543 = vmatpush1.bf16.msra.mxu0 0
      %544 = vmatprep.subr.bf16.mxu0 0
      %545 = vmatpush1.bf16.msra.mxu0 0
      %546 = vmatprep.subr.bf16.mxu0 0
      %547 = vmatpush1.bf16.msra.mxu0 0
      %548 = vmatprep.subr.bf16.mxu0 0
      %549 = vmatpush1.bf16.msra.mxu0 0
      %550 = vmatprep.subr.bf16.mxu0 0
      %551 = vmatpush1.bf16.msra.mxu0 0
      %552 = vmatprep.mubr.bf16.mxu0 0
      %553 = vmatmul.mubr.bf16.gmra.mrb[0].mxu0 %v512
      %v554 = vpop.f32.mrb[0].mxu0
      %v555 = vadd.f32 %v509, %v554
      %v556 = vpop.f32.mrb[0].mxu0
      %v557 = vadd.f32 %v509, %v556
      %v558 = vpop.f32.mrb[0].mxu0
      %v559 = vpop.f32.mrb[0].mxu0
      %560 = vdwg.mxu0
      %v561 = vmul.f32 %v555, 0.1
      %v562 = vmul.f32 %v557, 0.1
      %v563 = vadd.f32 %v561, %v226
      %v564 = vadd.f32 %v562, %v227
      %565 = vst [vmem:[%s224] sm:$0xff] %v563
      %566 = vst [vmem:[%s224 + $0x8] sm:$0xff] %v564
      %p567 = scmp.lt.s32.totalorder %s16, 1
      %s568 = scalar_select %p567, %s16, 1
      %s569 = smul.addr %s568, 2
      %s570 = smul.addr %s569, 8
      %s571 = scalar_lea.vmem %s5, %s570
      // Predicated region
      $region41: #{rb_forward.1} parent=39 // pred_check
        %p572 = pneg %p144
      $region42: #{rb_forward.1} parent=39 // pred_check_branch
        %574 = sbr.rel (%p572) target = $region44
      $region43: #{rb_forward.1} parent=39 // pred_region
        _
      $region44: #{rb_forward.1} parent=39 // pred_fallthru
        _
    $region40: #{rb_forward.1} parent=5 // pred_fallthru
      _
    %p575 = scmp.le.s32.totalorder 2, %s11
    // Predicated region
    $region45: #{rb_forward.1} parent=5 // pred_check
      %p576 = pneg %p575
    $region46: #{rb_forward.1} parent=5 // pred_check_branch
      %578 = sbr.rel (%p576) target = $region48
    $region47: #{rb_forward.1} parent=5 // pred_region
      %s579 = ssub.s32 %s11, 2
      // Predicated region
      $region49: #{rb_forward.1} parent=47 // pred_check
        %p580 = pneg %p150
      $region50: #{rb_forward.1} parent=47 // pred_check_branch
        %582 = sbr.rel (%p580) target = $region52
      $region51: #{rb_forward.1} parent=47 // pred_region
        %p583 = scmp.lt.s32.totalorder %s17, 1
        %s584 = scalar_select %p583, %s17, 1
        %s585 = smul.addr %s584, 2
        %s586 = smul.addr %s585, 8
        %s587 = scalar_lea.vmem %s5, %s586
      $region52: #{rb_forward.1} parent=47 // pred_fallthru
        _
    $region48: #{rb_forward.1} parent=5 // pred_fallthru
      _
  $region6: #{rb_forward.1} parent=0 // loop_footer
    %s15 = sadd.s32 1, %s11
  $region7: #{rb_forward.1} parent=0 // loop_footer_branch
    %10 = sbr.rel target = $region3
  $region8: #{rb_forward.1} parent=0 // loop_exit
    _

</llo_original>
